<compile_context>
chip_gen: v5e
topology: v5e:2x2
jax: 0.10.0
libtpu: 0.0.40
codegen_flags: <defaults>
</compile_context>

<pallas_src>
import jax
import jax.numpy as jnp
from jax.experimental import pallas as pl
from jax.experimental.pallas import tpu as pltpu

NUM_CLASSES = 10  # NUM_CLASSES is a module-level constant in the original file


def _round_up(n, m):
    return ((n + m - 1) // m) * m


def _tile_batch(B, block_b):
    """Pick (tile, padded_batch, num_tiles) for the lane-tiled batch axis."""
    # Keep the tile lane-aligned when it does not cover the whole array.
    block_b = max(128, (block_b // 128) * 128)
    if B <= 512:
        # Single grid step; a block equal to the full array needs no alignment.
        return B, B, 1
    # Lane-aligned tiles; aim for >= 2 grid steps so v7x can use both TCs.
    tb = min(block_b, _round_up((B + 1) // 2, 128))
    padded_b = _round_up(B, tb)
    return tb, padded_b, padded_b // tb


def _attack_mlp_kernel(xT_ref,
                       w1_ref, b1_ref,
                       w2_ref, b2_ref,
                       w3_ref, b3_ref,
                       w4_ref, b4_ref,
                       o_ref):
    cd = w1_ref.dtype
    xT = xT_ref[...]                                          # (NUM_CLASSES, TB) bf16

    # fc1 -> ReLU : h1^T = W1 @ x^T                           (128, TB)
    h = jnp.dot(w1_ref[...], xT, preferred_element_type=jnp.float32)
    h = jnp.maximum(h + b1_ref[...], 0.0).astype(cd)          # bf16 resident copy

    # fc2 -> ReLU                                             (64, TB)
    h = jnp.dot(w2_ref[...], h, preferred_element_type=jnp.float32)
    h = jnp.maximum(h + b2_ref[...], 0.0).astype(cd)

    # fc3 -> ReLU (kept f32 for the final reduction)          (64, TB)
    h = jnp.dot(w3_ref[...], h, preferred_element_type=jnp.float32)
    h = jnp.maximum(h + b3_ref[...], 0.0)

    # Final 64 -> 1 layer as a VPU multiply + sublane reduction; the result is
    # a lane-dense (1, TB) row -> dense sigmoid + dense store.
    logit = jnp.sum(h * w4_ref[...], axis=0, keepdims=True) + b4_ref[...]

    # sigmoid(z) = 1 / (1 + exp(-z)); both transcendental steps ride the EUP.
    o_ref[...] = pl.reciprocal(1.0 + jnp.exp(-logit), approx=True)


def attack_model_forward(x, params, *, block_b=4096, compute_dtype=jnp.bfloat16):
    """4-layer MLP forward pass, batch-along-lanes, fused into one Pallas kernel."""
    (w1, b1), (w2, b2), (w3, b3), (w4, b4) = params
    B, F = x.shape
    assert F == NUM_CLASSES

    tb, padded_b, num_tiles = _tile_batch(B, block_b)

    # Batch-along-lanes operand prep (layout plumbing only; XLA fuses the
    # cast / transpose / pad of x into a single pass over the tiny input).
    xT = x.astype(compute_dtype).T                        # (NUM_CLASSES, B)
    if padded_b != B:
        # TODO(synk): padding re-materializes x^T in HBM; it only triggers when
        # B is not a multiple of the tile, and the kernel is compute-bound.
        xT = jnp.pad(xT, ((0, 0), (0, padded_b - B)))

    w1c = w1.T.astype(compute_dtype)                      # (128, NUM_CLASSES)
    w2c = w2.T.astype(compute_dtype)                      # (64, 128)
    w3c = w3.T.astype(compute_dtype)                      # (64, 64)
    w4f = w4.astype(jnp.float32)                          # (64, 1) f32 for VPU reduce
    b1c = b1.T.astype(jnp.float32)                        # (128, 1)
    b2c = b2.T.astype(jnp.float32)                        # (64, 1)
    b3c = b3.T.astype(jnp.float32)                        # (64, 1)
    b4c = b4.astype(jnp.float32)                          # (1, 1)

    def resident(a):
        # Constant block index across the batch axis -> kept resident in VMEM.
        return pl.BlockSpec(a.shape, lambda i: (0, 0))

    cost = pl.CostEstimate(
        flops=2 * padded_b * (NUM_CLASSES * 128 + 128 * 64 + 64 * 64 + 64),
        transcendentals=2 * padded_b,  # exp + reciprocal per row
        bytes_accessed=(xT.size * xT.dtype.itemsize
                        + padded_b * 4
                        + sum(int(a.size) * a.dtype.itemsize
                              for a in (w1c, w2c, w3c, w4f, b1c, b2c, b3c, b4c))),
    )

    out = pl.pallas_call(
        _attack_mlp_kernel,
        out_shape=jax.ShapeDtypeStruct((1, padded_b), jnp.float32),
        grid=(num_tiles,),
        in_specs=[
            pl.BlockSpec((NUM_CLASSES, tb), lambda i: (0, i)),   # x^T tiled over lanes
            resident(w1c), resident(b1c),
            resident(w2c), resident(b2c),
            resident(w3c), resident(b3c),
            resident(w4f), resident(b4c),
        ],
        out_specs=pl.BlockSpec((1, tb), lambda i: (0, i)),       # lane-dense output row
        compiler_params=pltpu.CompilerParams(
            dimension_semantics=("parallel",)),
        cost_estimate=cost,
    )(xT, w1c, b1c, w2c, b2c, w3c, b3c, w4f, b4c)

    return out[0, :B].reshape(B, 1)


def init_params(key):
    """Deterministic parameter init. Weights stored as (in, out); biases as (1, out)."""
    dims = [(NUM_CLASSES, 128), (128, 64), (64, 64), (64, 1)]
    params = []
    for (fan_in, fan_out) in dims:
        key, kw, kb = jax.random.split(key, 3)
        bound = 1.0 / jnp.sqrt(fan_in)
        w = jax.random.uniform(kw, (fan_in, fan_out), jnp.float32, -bound, bound)
        b = jax.random.uniform(kb, (1, fan_out), jnp.float32, -bound, bound)
        params.append((w, b))
    return params


def reference_forward_bf16(x, params, compute_dtype=jnp.bfloat16):
    """Pure-JAX reference mirroring the kernel arithmetic (bf16 ops, f32 accum)."""
    (w1, b1), (w2, b2), (w3, b3), (w4, b4) = params
    cd = compute_dtype
    h = jnp.dot(x.astype(cd), w1.astype(cd), preferred_element_type=jnp.float32)
    h = jnp.maximum(h + b1, 0.0).astype(cd)
    h = jnp.dot(h, w2.astype(cd), preferred_element_type=jnp.float32)
    h = jnp.maximum(h + b2, 0.0).astype(cd)
    h = jnp.dot(h, w3.astype(cd), preferred_element_type=jnp.float32)
    h = jnp.maximum(h + b3, 0.0)
    logit = jnp.sum(h * w4.reshape(1, -1), axis=-1, keepdims=True) + b4
    return jax.nn.sigmoid(logit)


def reference_forward_f32(x, params):
    """Full-precision reference matching the PyTorch module semantics."""
    (w1, b1), (w2, b2), (w3, b3), (w4, b4) = params
    h = jnp.maximum(x @ w1 + b1, 0.0)
    h = jnp.maximum(h @ w2 + b2, 0.0)
    h = jnp.maximum(h @ w3 + b3, 0.0)
    return jax.nn.sigmoid(h @ w4 + b4)


if __name__ == "__main__":
    key = jax.random.PRNGKey(0)
    key, kx = jax.random.split(key)

    params = init_params(key)

    # Primary small-shape check (single-tile path). Inputs to the attack model
    # are (softmax) prediction vectors of size NUM_CLASSES.
    B = 8
    x = jax.nn.softmax(jax.random.normal(kx, (B, NUM_CLASSES), jnp.float32), axis=-1)
    out = jax.block_until_ready(attack_model_forward(x, params))
    assert out.shape == (B, 1)
    assert jnp.allclose(out, reference_forward_bf16(x, params), atol=5e-3), \
        "Pallas output mismatch vs bf16-mirroring reference"
    assert jnp.allclose(out, reference_forward_f32(x, params), atol=3e-2), \
        "Pallas output mismatch vs f32 reference"

    # Secondary check exercising the tiled path (padding + multi-step grid +
    # lane-dense tiled output writeback).
    key, kx2 = jax.random.split(key)
    B2 = 600
    x2 = jax.nn.softmax(jax.random.normal(kx2, (B2, NUM_CLASSES), jnp.float32), axis=-1)
    out2 = jax.block_until_ready(attack_model_forward(x2, params, block_b=256))
    assert out2.shape == (B2, 1)
    assert jnp.allclose(out2, reference_forward_bf16(x2, params), atol=5e-3), \
        "Pallas output mismatch vs reference on the multi-tile path"

    print("KERNEL_OK")
</pallas_src>

<mosaic_0001>
module attributes {stable_mosaic.version = 11 : i64} {
  func.func @_attack_mlp_kernel(%arg0: i32, %arg1: memref<10x8xbf16, #tpu.memory_space<vmem>>, %arg2: memref<128x10xbf16, #tpu.memory_space<vmem>>, %arg3: memref<128x1xf32, #tpu.memory_space<vmem>>, %arg4: memref<64x128xbf16, #tpu.memory_space<vmem>>, %arg5: memref<64x1xf32, #tpu.memory_space<vmem>>, %arg6: memref<64x64xbf16, #tpu.memory_space<vmem>>, %arg7: memref<64x1xf32, #tpu.memory_space<vmem>>, %arg8: memref<64x1xf32, #tpu.memory_space<vmem>>, %arg9: memref<1x1xf32, #tpu.memory_space<vmem>>, %arg10: memref<1x8xf32, #tpu.memory_space<vmem>>) attributes {dimension_semantics = [#tpu.dimension_semantics<parallel>], iteration_bounds = array<i64: 1>, scalar_prefetch = 0 : i64, scratch_operands = 0 : i64, tpu.core_type = #tpu.core_type<tc>, window_params = [{transform_indices = @transform_0, window_bounds = array<i64: 10, 8>}, {pipeline_mode = #tpu.pipeline_mode<synchronous>, transform_indices = @transform_1, window_bounds = array<i64: 128, 10>}, {pipeline_mode = #tpu.pipeline_mode<synchronous>, transform_indices = @transform_2, window_bounds = array<i64: 128, 1>}, {pipeline_mode = #tpu.pipeline_mode<synchronous>, transform_indices = @transform_3, window_bounds = array<i64: 64, 128>}, {pipeline_mode = #tpu.pipeline_mode<synchronous>, transform_indices = @transform_4, window_bounds = array<i64: 64, 1>}, {pipeline_mode = #tpu.pipeline_mode<synchronous>, transform_indices = @transform_5, window_bounds = array<i64: 64, 64>}, {pipeline_mode = #tpu.pipeline_mode<synchronous>, transform_indices = @transform_6, window_bounds = array<i64: 64, 1>}, {pipeline_mode = #tpu.pipeline_mode<synchronous>, transform_indices = @transform_7, window_bounds = array<i64: 64, 1>}, {pipeline_mode = #tpu.pipeline_mode<synchronous>, transform_indices = @transform_8, window_bounds = array<i64: 1, 1>}, {transform_indices = @transform_9, window_bounds = array<i64: 1, 8>}]} {
    %c0 = arith.constant 0 : index
    %c0_0 = arith.constant 0 : index
    %0 = vector.load %arg1[%c0, %c0_0] : memref<10x8xbf16, #tpu.memory_space<vmem>>, vector<10x8xbf16>
    %c0_1 = arith.constant 0 : index
    %c0_2 = arith.constant 0 : index
    %1 = vector.load %arg2[%c0_1, %c0_2] : memref<128x10xbf16, #tpu.memory_space<vmem>>, vector<128x10xbf16>
    %cst = arith.constant dense<0.000000e+00> : vector<128x8xf32>
    %2 = tpu.matmul %1, %0, %cst {dimension_numbers = #tpu.dot_dimension_numbers<[1], [0], [0], [1], [0, 0, 1, 1], [], []>} : vector<128x10xbf16>, vector<10x8xbf16>, vector<128x8xf32> -> vector<128x8xf32>
    %c0_3 = arith.constant 0 : index
    %c0_4 = arith.constant 0 : index
    %3 = vector.load %arg3[%c0_3, %c0_4] : memref<128x1xf32, #tpu.memory_space<vmem>>, vector<128x1xf32>
    %4 = vector.broadcast %3 : vector<128x1xf32> to vector<128x8xf32>
    %5 = arith.addf %2, %4 : vector<128x8xf32>
    %cst_5 = arith.constant 0.000000e+00 : f32
    %6 = vector.broadcast %cst_5 : f32 to vector<128x8xf32>
    %7 = arith.maximumf %5, %6 : vector<128x8xf32>
    %8 = arith.truncf %7 : vector<128x8xf32> to vector<128x8xbf16>
    %c0_6 = arith.constant 0 : index
    %c0_7 = arith.constant 0 : index
    %9 = vector.load %arg4[%c0_6, %c0_7] : memref<64x128xbf16, #tpu.memory_space<vmem>>, vector<64x128xbf16>
    %cst_8 = arith.constant dense<0.000000e+00> : vector<64x8xf32>
    %10 = tpu.matmul %9, %8, %cst_8 {dimension_numbers = #tpu.dot_dimension_numbers<[1], [0], [0], [1], [0, 0, 1, 1], [], []>} : vector<64x128xbf16>, vector<128x8xbf16>, vector<64x8xf32> -> vector<64x8xf32>
    %c0_9 = arith.constant 0 : index
    %c0_10 = arith.constant 0 : index
    %11 = vector.load %arg5[%c0_9, %c0_10] : memref<64x1xf32, #tpu.memory_space<vmem>>, vector<64x1xf32>
    %12 = vector.broadcast %11 : vector<64x1xf32> to vector<64x8xf32>
    %13 = arith.addf %10, %12 : vector<64x8xf32>
    %cst_11 = arith.constant 0.000000e+00 : f32
    %14 = vector.broadcast %cst_11 : f32 to vector<64x8xf32>
    %15 = arith.maximumf %13, %14 : vector<64x8xf32>
    %16 = arith.truncf %15 : vector<64x8xf32> to vector<64x8xbf16>
    %c0_12 = arith.constant 0 : index
    %c0_13 = arith.constant 0 : index
    %17 = vector.load %arg6[%c0_12, %c0_13] : memref<64x64xbf16, #tpu.memory_space<vmem>>, vector<64x64xbf16>
    %cst_14 = arith.constant dense<0.000000e+00> : vector<64x8xf32>
    %18 = tpu.matmul %17, %16, %cst_14 {dimension_numbers = #tpu.dot_dimension_numbers<[1], [0], [0], [1], [0, 0, 1, 1], [], []>} : vector<64x64xbf16>, vector<64x8xbf16>, vector<64x8xf32> -> vector<64x8xf32>
    %c0_15 = arith.constant 0 : index
    %c0_16 = arith.constant 0 : index
    %19 = vector.load %arg7[%c0_15, %c0_16] : memref<64x1xf32, #tpu.memory_space<vmem>>, vector<64x1xf32>
    %20 = vector.broadcast %19 : vector<64x1xf32> to vector<64x8xf32>
    %21 = arith.addf %18, %20 : vector<64x8xf32>
    %cst_17 = arith.constant 0.000000e+00 : f32
    %22 = vector.broadcast %cst_17 : f32 to vector<64x8xf32>
    %23 = arith.maximumf %21, %22 : vector<64x8xf32>
    %c0_18 = arith.constant 0 : index
    %c0_19 = arith.constant 0 : index
    %24 = vector.load %arg8[%c0_18, %c0_19] : memref<64x1xf32, #tpu.memory_space<vmem>>, vector<64x1xf32>
    %25 = vector.broadcast %24 : vector<64x1xf32> to vector<64x8xf32>
    %26 = arith.mulf %23, %25 : vector<64x8xf32>
    %cst_20 = arith.constant dense<0.000000e+00> : vector<8xf32>
    %27 = vector.multi_reduction <add>, %26, %cst_20 [0] : vector<64x8xf32> to vector<8xf32>
    %28 = vector.shape_cast %27 : vector<8xf32> to vector<1x8xf32>
    %c0_21 = arith.constant 0 : index
    %c0_22 = arith.constant 0 : index
    %29 = vector.load %arg9[%c0_21, %c0_22] : memref<1x1xf32, #tpu.memory_space<vmem>>, vector<1x1xf32>
    %30 = vector.broadcast %29 : vector<1x1xf32> to vector<1x8xf32>
    %31 = arith.addf %28, %30 : vector<1x8xf32>
    %cst_23 = arith.constant 0.000000e+00 : f32
    %32 = vector.broadcast %cst_23 : f32 to vector<1x8xf32>
    %33 = arith.subf %32, %31 : vector<1x8xf32>
    %34 = math.exp %33 : vector<1x8xf32>
    %cst_24 = arith.constant 1.000000e+00 : f32
    %35 = vector.broadcast %cst_24 : f32 to vector<1x8xf32>
    %36 = arith.addf %35, %34 : vector<1x8xf32>
    %37 = tpu.reciprocal %36 {approx = true} : vector<1x8xf32> -> vector<1x8xf32>
    %c0_25 = arith.constant 0 : index
    %c0_26 = arith.constant 0 : index
    %38 = vector.load %arg10[%c0_25, %c0_26] : memref<1x8xf32, #tpu.memory_space<vmem>>, vector<1x8xf32>
    tpu.vector_store %arg10[%c0_25, %c0_26], %37 {strides = array<i32>} : memref<1x8xf32, #tpu.memory_space<vmem>>, vector<1x8xf32>,
    return
  }
  func.func @transform_0(%arg0: i32) -> (i32, i32) {
    %c0_i32 = arith.constant 0 : i32
    %c0_i32_0 = arith.constant 0 : i32
    return %c0_i32, %arg0 : i32, i32
  }
  func.func @transform_1(%arg0: i32) -> (i32, i32) {
    %c0_i32 = arith.constant 0 : i32
    %c0_i32_0 = arith.constant 0 : i32
    %c0_i32_1 = arith.constant 0 : i32
    return %c0_i32, %c0_i32_0 : i32, i32
  }
  func.func @transform_2(%arg0: i32) -> (i32, i32) {
    %c0_i32 = arith.constant 0 : i32
    %c0_i32_0 = arith.constant 0 : i32
    %c0_i32_1 = arith.constant 0 : i32
    return %c0_i32, %c0_i32_0 : i32, i32
  }
  func.func @transform_3(%arg0: i32) -> (i32, i32) {
    %c0_i32 = arith.constant 0 : i32
    %c0_i32_0 = arith.constant 0 : i32
    %c0_i32_1 = arith.constant 0 : i32
    return %c0_i32, %c0_i32_0 : i32, i32
  }
  func.func @transform_4(%arg0: i32) -> (i32, i32) {
    %c0_i32 = arith.constant 0 : i32
    %c0_i32_0 = arith.constant 0 : i32
    %c0_i32_1 = arith.constant 0 : i32
    return %c0_i32, %c0_i32_0 : i32, i32
  }
  func.func @transform_5(%arg0: i32) -> (i32, i32) {
    %c0_i32 = arith.constant 0 : i32
    %c0_i32_0 = arith.constant 0 : i32
    %c0_i32_1 = arith.constant 0 : i32
    return %c0_i32, %c0_i32_0 : i32, i32
  }
  func.func @transform_6(%arg0: i32) -> (i32, i32) {
    %c0_i32 = arith.constant 0 : i32
    %c0_i32_0 = arith.constant 0 : i32
    %c0_i32_1 = arith.constant 0 : i32
    return %c0_i32, %c0_i32_0 : i32, i32
  }
  func.func @transform_7(%arg0: i32) -> (i32, i32) {
    %c0_i32 = arith.constant 0 : i32
    %c0_i32_0 = arith.constant 0 : i32
    %c0_i32_1 = arith.constant 0 : i32
    return %c0_i32, %c0_i32_0 : i32, i32
  }
  func.func @transform_8(%arg0: i32) -> (i32, i32) {
    %c0_i32 = arith.constant 0 : i32
    %c0_i32_0 = arith.constant 0 : i32
    %c0_i32_1 = arith.constant 0 : i32
    return %c0_i32, %c0_i32_0 : i32, i32
  }
  func.func @transform_9(%arg0: i32) -> (i32, i32) {
    %c0_i32 = arith.constant 0 : i32
    %c0_i32_0 = arith.constant 0 : i32
    return %c0_i32, %arg0 : i32, i32
  }
}

</mosaic_0001>

<llo_original>
// kernel: tpu_custom_call.1
$region0: #{tpu_custom_call.1}
  #allocation0 [shape = 'u32[]', space=smem, size = 0x4, offset = 0x4, fixed_abs, tag = 'smem constant byte address 0x4 - core index']
  #allocation1 [shape = 'u32[72,128]{1,0:T(1,128)}', space=vmem, size = 0x9000, scoped, tag = 'internal scratch']
  #allocation2 [shape = 'f32[1,1]{1,0:T(1,128)S(1)}', space=vmem, size = 0x200, scoped, tag = 'scoped memory for tpu_custom_call.1']
  %s0 = inlined_call_operand.vmem [shape: bf16[10,8], index: 0, kind: input, shape index: {}]
  %s1 = inlined_call_operand.vmem [shape: bf16[128,10], index: 1, kind: input, shape index: {}]
  %s2 = inlined_call_operand.vmem [shape: f32[128,1], index: 2, kind: input, shape index: {}]
  %s3 = inlined_call_operand.vmem [shape: bf16[64,128], index: 3, kind: input, shape index: {}]
  %s4 = inlined_call_operand.vmem [shape: f32[64,1], index: 4, kind: input, shape index: {}]
  %s5 = inlined_call_operand.vmem [shape: bf16[64,64], index: 5, kind: input, shape index: {}]
  %s6 = inlined_call_operand.vmem [shape: f32[64,1], index: 6, kind: input, shape index: {}]
  %s7 = inlined_call_operand.vmem [shape: f32[64,1], index: 7, kind: input, shape index: {}]
  %s8 = inlined_call_operand.<no memory space> [shape: f32[1,1], index: 8, kind: input, shape index: {}]
  %s9 = inlined_call_operand.hbm [shape: f32[1,8], index: 9, kind: output, shape index: {}]
  %s10 = sld [smem:[#allocation0]]
  $region46: #{tpu_custom_call.1} parent=0
    _
  %s12 = ssub.s32 1, %s10
  %s13 = scalar_select 0, %s12, %s10
  %v14 = vstv %s8
  %15 = vst [vmem:[#allocation2] sm:$0x1] %v14
  $region1: #{tpu_custom_call.1} parent=0
    #allocation3 [shape = 'u8[512]{0}', space=vmem, size = 0x400, scoped, tag = 'output window, operand 0, single buffered']
    #allocation4 [shape = 's32[1]{0}', space=sflag, size = 0x4, scoped, tag = 'scoped memory for tpu_custom_call.1']
    %16 = vsyncpa [#allocation4], 0
    // Predicated region
    $region2: #{tpu_custom_call.1} parent=1 // pred_check
      _
    $region3: #{tpu_custom_call.1} parent=1 // pred_check_branch
      %18 = sbr.rel (0) target = $region5
    $region4: #{tpu_custom_call.1} parent=1 // pred_region
      _
    $region5: #{tpu_custom_call.1} parent=1 // pred_fallthru
      _
    // Predicated region
    $region6: #{tpu_custom_call.1} parent=1 // pred_check
      _
    $region7: #{tpu_custom_call.1} parent=1 // pred_check_branch
      %20 = sbr.rel (0) target = $region9
    $region8: #{tpu_custom_call.1} parent=1 // pred_region
      _
    $region9: #{tpu_custom_call.1} parent=1 // pred_fallthru
      _
    // Predicated region
    $region10: #{tpu_custom_call.1} parent=1 // pred_check
      _
    $region11: #{tpu_custom_call.1} parent=1 // pred_check_branch
      %22 = sbr.rel (0) target = $region13
    $region12: #{tpu_custom_call.1} parent=1 // pred_region
      _
    $region13: #{tpu_custom_call.1} parent=1 // pred_fallthru
      _
    // Predicated region
    $region14: #{tpu_custom_call.1} parent=1 // pred_check
      _
    $region15: #{tpu_custom_call.1} parent=1 // pred_check_branch
      %24 = sbr.rel (0) target = $region17
    $region16: #{tpu_custom_call.1} parent=1 // pred_region
      _
    $region17: #{tpu_custom_call.1} parent=1 // pred_fallthru
      _
    // Predicated region
    $region18: #{tpu_custom_call.1} parent=1 // pred_check
      _
    $region19: #{tpu_custom_call.1} parent=1 // pred_check_branch
      %26 = sbr.rel (0) target = $region21
    $region20: #{tpu_custom_call.1} parent=1 // pred_region
      _
    $region21: #{tpu_custom_call.1} parent=1 // pred_fallthru
      _
    // Predicated region
    $region22: #{tpu_custom_call.1} parent=1 // pred_check
      _
    $region23: #{tpu_custom_call.1} parent=1 // pred_check_branch
      %28 = sbr.rel (0) target = $region25
    $region24: #{tpu_custom_call.1} parent=1 // pred_region
      _
    $region25: #{tpu_custom_call.1} parent=1 // pred_fallthru
      _
    // Predicated region
    $region26: #{tpu_custom_call.1} parent=1 // pred_check
      _
    $region27: #{tpu_custom_call.1} parent=1 // pred_check_branch
      %30 = sbr.rel (0) target = $region29
    $region28: #{tpu_custom_call.1} parent=1 // pred_region
      _
    $region29: #{tpu_custom_call.1} parent=1 // pred_fallthru
      _
    // Predicated region
    $region30: #{tpu_custom_call.1} parent=1 // pred_check
      _
    $region31: #{tpu_custom_call.1} parent=1 // pred_check_branch
      %32 = sbr.rel (0) target = $region33
    $region32: #{tpu_custom_call.1} parent=1 // pred_region
      _
    $region33: #{tpu_custom_call.1} parent=1 // pred_fallthru
      _
    // Predicated region
    $region34: #{tpu_custom_call.1} parent=1 // pred_check
      _
    $region35: #{tpu_custom_call.1} parent=1 // pred_check_branch
      %34 = sbr.rel (0) target = $region37
    $region36: #{tpu_custom_call.1} parent=1 // pred_region
      _
    $region37: #{tpu_custom_call.1} parent=1 // pred_fallthru
      _
    %v36 = vld [vmem:[%s0] sm:$0xf]
    %v37 = vld [vmem:[%s0 + $0x4] sm:$0x1]
    %v38 = vld [vmem:[%s1] sm:$0xf]
    %v39 = vld [vmem:[%s1 + $0x4] sm:$0xf]
    %v40 = vld [vmem:[%s1 + $0x8] sm:$0xf]
    %v41 = vld [vmem:[%s1 + $0xc] sm:$0xf]
    %v42 = vld [vmem:[%s1 + $0x10] sm:$0xf]
    %v43 = vld [vmem:[%s1 + $0x14] sm:$0xf]
    %v44 = vld [vmem:[%s1 + $0x18] sm:$0xf]
    %v45 = vld [vmem:[%s1 + $0x1c] sm:$0xf]
    %v46 = vld [vmem:[%s1 + $0x20] sm:$0xf]
    %v47 = vld [vmem:[%s1 + $0x24] sm:$0xf]
    %v48 = vld [vmem:[%s1 + $0x28] sm:$0xf]
    %v49 = vld [vmem:[%s1 + $0x2c] sm:$0xf]
    %v50 = vld [vmem:[%s1 + $0x30] sm:$0xf]
    %v51 = vld [vmem:[%s1 + $0x34] sm:$0xf]
    %v52 = vld [vmem:[%s1 + $0x38] sm:$0xf]
    %v53 = vld [vmem:[%s1 + $0x3c] sm:$0xf]
    %v54 = vld [vmem:[%s2] sm:$0xff]
    %v55 = vld [vmem:[%s2 + $0x8] sm:$0xff]
    %v56 = vld [vmem:[%s2 + $0x10] sm:$0xff]
    %v57 = vld [vmem:[%s2 + $0x18] sm:$0xff]
    %v58 = vld [vmem:[%s2 + $0x20] sm:$0xff]
    %v59 = vld [vmem:[%s2 + $0x28] sm:$0xff]
    %v60 = vld [vmem:[%s2 + $0x30] sm:$0xff]
    %v61 = vld [vmem:[%s2 + $0x38] sm:$0xff]
    %v62 = vld [vmem:[%s2 + $0x40] sm:$0xff]
    %v63 = vld [vmem:[%s2 + $0x48] sm:$0xff]
    %v64 = vld [vmem:[%s2 + $0x50] sm:$0xff]
    %v65 = vld [vmem:[%s2 + $0x58] sm:$0xff]
    %v66 = vld [vmem:[%s2 + $0x60] sm:$0xff]
    %v67 = vld [vmem:[%s2 + $0x68] sm:$0xff]
    %v68 = vld [vmem:[%s2 + $0x70] sm:$0xff]
    %v69 = vld [vmem:[%s2 + $0x78] sm:$0xff]
    %71 = vset.pattern.permute.xlu0 0
    %72 = vperm.xlu0 %71, %v54
    %v73 = vpop.permute.xlu0 %72
    %76 = vset.pattern.permute.xlu0 0
    %77 = vperm.xlu0 %76, %v55
    %v78 = vpop.permute.xlu0 %77
    %81 = vset.pattern.permute.xlu0 0
    %82 = vperm.xlu0 %81, %v56
    %v83 = vpop.permute.xlu0 %82
    %86 = vset.pattern.permute.xlu0 0
    %87 = vperm.xlu0 %86, %v57
    %v88 = vpop.permute.xlu0 %87
    %91 = vset.pattern.permute.xlu0 0
    %92 = vperm.xlu0 %91, %v58
    %v93 = vpop.permute.xlu0 %92
    %96 = vset.pattern.permute.xlu0 0
    %97 = vperm.xlu0 %96, %v59
    %v98 = vpop.permute.xlu0 %97
    %101 = vset.pattern.permute.xlu0 0
    %102 = vperm.xlu0 %101, %v60
    %v103 = vpop.permute.xlu0 %102
    %106 = vset.pattern.permute.xlu0 0
    %107 = vperm.xlu0 %106, %v61
    %v108 = vpop.permute.xlu0 %107
    %111 = vset.pattern.permute.xlu0 0
    %112 = vperm.xlu0 %111, %v62
    %v113 = vpop.permute.xlu0 %112
    %116 = vset.pattern.permute.xlu0 0
    %117 = vperm.xlu0 %116, %v63
    %v118 = vpop.permute.xlu0 %117
    %121 = vset.pattern.permute.xlu0 0
    %122 = vperm.xlu0 %121, %v64
    %v123 = vpop.permute.xlu0 %122
    %126 = vset.pattern.permute.xlu0 0
    %127 = vperm.xlu0 %126, %v65
    %v128 = vpop.permute.xlu0 %127
    %131 = vset.pattern.permute.xlu0 0
    %132 = vperm.xlu0 %131, %v66
    %v133 = vpop.permute.xlu0 %132
    %136 = vset.pattern.permute.xlu0 0
    %137 = vperm.xlu0 %136, %v67
    %v138 = vpop.permute.xlu0 %137
    %141 = vset.pattern.permute.xlu0 0
    %142 = vperm.xlu0 %141, %v68
    %v143 = vpop.permute.xlu0 %142
    %146 = vset.pattern.permute.xlu0 0
    %147 = vperm.xlu0 %146, %v69
    %v148 = vpop.permute.xlu0 %147
    %v166 = vunpack.c.l.b16 %v38
    %v167 = vunpack.c.l.b16 %v39
    %v168 = vunpack.c.l.b16 %v40
    %v169 = vunpack.c.l.b16 %v41
    %v170 = vunpack.c.l.b16 %v42
    %v171 = vunpack.c.l.b16 %v43
    %v172 = vunpack.c.l.b16 %v44
    %v173 = vunpack.c.l.b16 %v45
    %v174 = vunpack.c.l.b16 %v46
    %v175 = vunpack.c.l.b16 %v47
    %v176 = vunpack.c.l.b16 %v48
    %v177 = vunpack.c.l.b16 %v49
    %v178 = vunpack.c.l.b16 %v50
    %v179 = vunpack.c.l.b16 %v51
    %v180 = vunpack.c.l.b16 %v52
    %v181 = vunpack.c.l.b16 %v53
    %v182 = vpack.c.b16 %v167, %v166
    %v183 = vpack.c.b16 %v169, %v168
    %v184 = vpack.c.b16 %v171, %v170
    %v185 = vpack.c.b16 %v173, %v172
    %v186 = vpack.c.b16 %v175, %v174
    %v187 = vpack.c.b16 %v177, %v176
    %v188 = vpack.c.b16 %v179, %v178
    %v189 = vpack.c.b16 %v181, %v180
    %v192 = vunpack.c.l.b16 %v36
    %v193 = vunpack.c.l.b16 %v37
    %v194 = vpack.c.b16 %v193, %v192
    %vm195 = vcmask 80896
    %v197 = vsel %vm195, %v182, 0
    %v200 = vsel %vm195, %v183, 0
    %v203 = vsel %vm195, %v184, 0
    %v206 = vsel %vm195, %v185, 0
    %v209 = vsel %vm195, %v186, 0
    %v212 = vsel %vm195, %v187, 0
    %v215 = vsel %vm195, %v188, 0
    %v218 = vsel %vm195, %v189, 0
    %vm220 = vcmask 1044480
    %v222 = vsel %vm220, %v194, 0
    %224 = vmatpush.bf16.msra.mxu0 0
    %225 = vmatpush.bf16.msra.mxu0 0
    %226 = vmatpush.bf16.msra.mxu0 0
    %227 = vmatpush.bf16.msra.mxu0 0
    %228 = vmatpush.bf16.msra.mxu0 0
    %229 = vmatpush.bf16.msra.mxu0 0
    %230 = vmatpush.bf16.msra.mxu0 0
    %231 = vmatpush.bf16.msra.mxu0 %v222
    %232 = vmatmul.bf16.gmra.mxu0 %v197
    %v233 = vpop.f32.mrf.mxu0
    %v234 = vadd.f32 %v73, %v233
    %v235 = vpop.f32.mrf.mxu0
    %v236 = vadd.f32 %v78, %v235
    %237 = vmatmul.bf16.gmra.mxu0 %v200
    %v238 = vpop.f32.mrf.mxu0
    %v239 = vadd.f32 %v83, %v238
    %v240 = vpop.f32.mrf.mxu0
    %v241 = vadd.f32 %v88, %v240
    %242 = vmatmul.bf16.gmra.mxu0 %v203
    %v243 = vpop.f32.mrf.mxu0
    %v244 = vadd.f32 %v93, %v243
    %v245 = vpop.f32.mrf.mxu0
    %v246 = vadd.f32 %v98, %v245
    %247 = vmatmul.bf16.gmra.mxu0 %v206
    %v248 = vpop.f32.mrf.mxu0
    %v249 = vadd.f32 %v103, %v248
    %v250 = vpop.f32.mrf.mxu0
    %v251 = vadd.f32 %v108, %v250
    %252 = vmatmul.bf16.gmra.mxu0 %v209
    %v253 = vpop.f32.mrf.mxu0
    %v254 = vadd.f32 %v113, %v253
    %v255 = vpop.f32.mrf.mxu0
    %v256 = vadd.f32 %v118, %v255
    %257 = vmatmul.bf16.gmra.mxu0 %v212
    %v258 = vpop.f32.mrf.mxu0
    %v259 = vadd.f32 %v123, %v258
    %v260 = vpop.f32.mrf.mxu0
    %v261 = vadd.f32 %v128, %v260
    %262 = vmatmul.bf16.gmra.mxu0 %v215
    %v263 = vpop.f32.mrf.mxu0
    %v264 = vadd.f32 %v133, %v263
    %v265 = vpop.f32.mrf.mxu0
    %v266 = vadd.f32 %v138, %v265
    %267 = vmatmul.bf16.gmra.mxu0 %v218
    %v268 = vpop.f32.mrf.mxu0
    %v269 = vadd.f32 %v143, %v268
    %v270 = vpop.f32.mrf.mxu0
    %v271 = vadd.f32 %v148, %v270
    %272 = vdwg.mxu0
    %v273 = vmax.f32 %v234, 0.0
    %v274 = vmax.f32 %v236, 0.0
    %v275 = vmax.f32 %v239, 0.0
    %v276 = vmax.f32 %v241, 0.0
    %v277 = vmax.f32 %v244, 0.0
    %v278 = vmax.f32 %v246, 0.0
    %v279 = vmax.f32 %v249, 0.0
    %v280 = vmax.f32 %v251, 0.0
    %v281 = vmax.f32 %v254, 0.0
    %v282 = vmax.f32 %v256, 0.0
    %v283 = vmax.f32 %v259, 0.0
    %v284 = vmax.f32 %v261, 0.0
    %v285 = vmax.f32 %v264, 0.0
    %v286 = vmax.f32 %v266, 0.0
    %v287 = vmax.f32 %v269, 0.0
    %v288 = vmax.f32 %v271, 0.0
    %v289 = vpack.c.bf16 %v274, %v273
    %v290 = vpack.c.bf16 %v276, %v275
    %v291 = vpack.c.bf16 %v278, %v277
    %v292 = vpack.c.bf16 %v280, %v279
    %v293 = vpack.c.bf16 %v282, %v281
    %v294 = vpack.c.bf16 %v284, %v283
    %v295 = vpack.c.bf16 %v286, %v285
    %v296 = vpack.c.bf16 %v288, %v287
    %v297 = vld [vmem:[%s3] sm:$0xf]
    %v298 = vld [vmem:[%s3 + $0x4] sm:$0xf]
    %v299 = vld [vmem:[%s3 + $0x8] sm:$0xf]
    %v300 = vld [vmem:[%s3 + $0xc] sm:$0xf]
    %v301 = vld [vmem:[%s3 + $0x10] sm:$0xf]
    %v302 = vld [vmem:[%s3 + $0x14] sm:$0xf]
    %v303 = vld [vmem:[%s3 + $0x18] sm:$0xf]
    %v304 = vld [vmem:[%s3 + $0x1c] sm:$0xf]
    %v305 = vld [vmem:[%s4] sm:$0xff]
    %v306 = vld [vmem:[%s4 + $0x8] sm:$0xff]
    %v307 = vld [vmem:[%s4 + $0x10] sm:$0xff]
    %v308 = vld [vmem:[%s4 + $0x18] sm:$0xff]
    %v309 = vld [vmem:[%s4 + $0x20] sm:$0xff]
    %v310 = vld [vmem:[%s4 + $0x28] sm:$0xff]
    %v311 = vld [vmem:[%s4 + $0x30] sm:$0xff]
    %v312 = vld [vmem:[%s4 + $0x38] sm:$0xff]
    %314 = vset.pattern.permute.xlu0 0
    %315 = vperm.xlu0 %314, %v305
    %v316 = vpop.permute.xlu0 %315
    %319 = vset.pattern.permute.xlu0 0
    %320 = vperm.xlu0 %319, %v306
    %v321 = vpop.permute.xlu0 %320
    %324 = vset.pattern.permute.xlu0 0
    %325 = vperm.xlu0 %324, %v307
    %v326 = vpop.permute.xlu0 %325
    %329 = vset.pattern.permute.xlu0 0
    %330 = vperm.xlu0 %329, %v308
    %v331 = vpop.permute.xlu0 %330
    %334 = vset.pattern.permute.xlu0 0
    %335 = vperm.xlu0 %334, %v309
    %v336 = vpop.permute.xlu0 %335
    %339 = vset.pattern.permute.xlu0 0
    %340 = vperm.xlu0 %339, %v310
    %v341 = vpop.permute.xlu0 %340
    %344 = vset.pattern.permute.xlu0 0
    %345 = vperm.xlu0 %344, %v311
    %v346 = vpop.permute.xlu0 %345
    %349 = vset.pattern.permute.xlu0 0
    %350 = vperm.xlu0 %349, %v312
    %v351 = vpop.permute.xlu0 %350
    %v361 = vunpack.c.l.b16 %v297
    %v362 = vunpack.c.l.b16 %v298
    %v363 = vunpack.c.l.b16 %v299
    %v364 = vunpack.c.l.b16 %v300
    %v365 = vunpack.c.l.b16 %v301
    %v366 = vunpack.c.l.b16 %v302
    %v367 = vunpack.c.l.b16 %v303
    %v368 = vunpack.c.l.b16 %v304
    %v369 = vpack.c.b16 %v362, %v361
    %v370 = vpack.c.b16 %v364, %v363
    %v371 = vpack.c.b16 %v366, %v365
    %v372 = vpack.c.b16 %v368, %v367
    %377 = vmatpush.bf16.msra.mxu0 %v296
    %378 = vmatpush.bf16.msra.mxu0 %v295
    %379 = vmatpush.bf16.msra.mxu0 %v294
    %380 = vmatpush.bf16.msra.mxu0 %v293
    %381 = vmatpush.bf16.msra.mxu0 %v292
    %382 = vmatpush.bf16.msra.mxu0 %v291
    %383 = vmatpush.bf16.msra.mxu0 %v290
    %384 = vmatpush.bf16.msra.mxu0 %v289
    %385 = vmatmul.bf16.gmra.mxu0 %v369
    %v386 = vpop.f32.mrf.mxu0
    %v387 = vadd.f32 %v316, %v386
    %v388 = vpop.f32.mrf.mxu0
    %v389 = vadd.f32 %v321, %v388
    %390 = vmatmul.bf16.gmra.mxu0 %v370
    %v391 = vpop.f32.mrf.mxu0
    %v392 = vadd.f32 %v326, %v391
    %v393 = vpop.f32.mrf.mxu0
    %v394 = vadd.f32 %v331, %v393
    %395 = vmatmul.bf16.gmra.mxu0 %v371
    %v396 = vpop.f32.mrf.mxu0
    %v397 = vadd.f32 %v336, %v396
    %v398 = vpop.f32.mrf.mxu0
    %v399 = vadd.f32 %v341, %v398
    %400 = vmatmul.bf16.gmra.mxu0 %v372
    %v401 = vpop.f32.mrf.mxu0
    %v402 = vadd.f32 %v346, %v401
    %v403 = vpop.f32.mrf.mxu0
    %v404 = vadd.f32 %v351, %v403
    %405 = vdwg.mxu0
    %v406 = vmax.f32 %v387, 0.0
    %v407 = vmax.f32 %v389, 0.0
    %v408 = vmax.f32 %v392, 0.0
    %v409 = vmax.f32 %v394, 0.0
    %v410 = vmax.f32 %v397, 0.0
    %v411 = vmax.f32 %v399, 0.0
    %v412 = vmax.f32 %v402, 0.0
    %v413 = vmax.f32 %v404, 0.0
    %v414 = vpack.c.bf16 %v407, %v406
    %v415 = vpack.c.bf16 %v409, %v408
    %v416 = vpack.c.bf16 %v411, %v410
    %v417 = vpack.c.bf16 %v413, %v412
    %v418 = vld [vmem:[%s5] sm:$0xf]
    %v419 = vld [vmem:[%s5 + $0x4] sm:$0xf]
    %v420 = vld [vmem:[%s5 + $0x8] sm:$0xf]
    %v421 = vld [vmem:[%s5 + $0xc] sm:$0xf]
    %v422 = vld [vmem:[%s5 + $0x10] sm:$0xf]
    %v423 = vld [vmem:[%s5 + $0x14] sm:$0xf]
    %v424 = vld [vmem:[%s5 + $0x18] sm:$0xf]
    %v425 = vld [vmem:[%s5 + $0x1c] sm:$0xf]
    %v426 = vld [vmem:[%s6] sm:$0xff]
    %v427 = vld [vmem:[%s6 + $0x8] sm:$0xff]
    %v428 = vld [vmem:[%s6 + $0x10] sm:$0xff]
    %v429 = vld [vmem:[%s6 + $0x18] sm:$0xff]
    %v430 = vld [vmem:[%s6 + $0x20] sm:$0xff]
    %v431 = vld [vmem:[%s6 + $0x28] sm:$0xff]
    %v432 = vld [vmem:[%s6 + $0x30] sm:$0xff]
    %v433 = vld [vmem:[%s6 + $0x38] sm:$0xff]
    %435 = vset.pattern.permute.xlu0 0
    %436 = vperm.xlu0 %435, %v426
    %v437 = vpop.permute.xlu0 %436
    %440 = vset.pattern.permute.xlu0 0
    %441 = vperm.xlu0 %440, %v427
    %v442 = vpop.permute.xlu0 %441
    %445 = vset.pattern.permute.xlu0 0
    %446 = vperm.xlu0 %445, %v428
    %v447 = vpop.permute.xlu0 %446
    %450 = vset.pattern.permute.xlu0 0
    %451 = vperm.xlu0 %450, %v429
    %v452 = vpop.permute.xlu0 %451
    %455 = vset.pattern.permute.xlu0 0
    %456 = vperm.xlu0 %455, %v430
    %v457 = vpop.permute.xlu0 %456
    %460 = vset.pattern.permute.xlu0 0
    %461 = vperm.xlu0 %460, %v431
    %v462 = vpop.permute.xlu0 %461
    %465 = vset.pattern.permute.xlu0 0
    %466 = vperm.xlu0 %465, %v432
    %v467 = vpop.permute.xlu0 %466
    %470 = vset.pattern.permute.xlu0 0
    %471 = vperm.xlu0 %470, %v433
    %v472 = vpop.permute.xlu0 %471
    %v482 = vunpack.c.l.b16 %v418
    %v483 = vunpack.c.l.b16 %v419
    %v484 = vunpack.c.l.b16 %v420
    %v485 = vunpack.c.l.b16 %v421
    %v486 = vunpack.c.l.b16 %v422
    %v487 = vunpack.c.l.b16 %v423
    %v488 = vunpack.c.l.b16 %v424
    %v489 = vunpack.c.l.b16 %v425
    %v490 = vpack.c.b16 %v483, %v482
    %v491 = vpack.c.b16 %v485, %v484
    %v492 = vpack.c.b16 %v487, %v486
    %v493 = vpack.c.b16 %v489, %v488
    %vm494 = vcmask 523264
    %v496 = vsel %vm494, %v490, 0
    %v499 = vsel %vm494, %v491, 0
    %v502 = vsel %vm494, %v492, 0
    %v505 = vsel %vm494, %v493, 0
    %507 = vmatpush.bf16.msra.mxu0 0
    %508 = vmatpush.bf16.msra.mxu0 0
    %509 = vmatpush.bf16.msra.mxu0 0
    %510 = vmatpush.bf16.msra.mxu0 0
    %511 = vmatpush.bf16.msra.mxu0 %v417
    %512 = vmatpush.bf16.msra.mxu0 %v416
    %513 = vmatpush.bf16.msra.mxu0 %v415
    %514 = vmatpush.bf16.msra.mxu0 %v414
    %515 = vmatmul.bf16.gmra.mxu0 %v496
    %v516 = vpop.f32.mrf.mxu0
    %v517 = vadd.f32 %v437, %v516
    %v518 = vpop.f32.mrf.mxu0
    %v519 = vadd.f32 %v442, %v518
    %520 = vmatmul.bf16.gmra.mxu0 %v499
    %v521 = vpop.f32.mrf.mxu0
    %v522 = vadd.f32 %v447, %v521
    %v523 = vpop.f32.mrf.mxu0
    %v524 = vadd.f32 %v452, %v523
    %525 = vmatmul.bf16.gmra.mxu0 %v502
    %v526 = vpop.f32.mrf.mxu0
    %v527 = vadd.f32 %v457, %v526
    %v528 = vpop.f32.mrf.mxu0
    %v529 = vadd.f32 %v462, %v528
    %530 = vmatmul.bf16.gmra.mxu0 %v505
    %v531 = vpop.f32.mrf.mxu0
    %v532 = vadd.f32 %v467, %v531
    %v533 = vpop.f32.mrf.mxu0
    %v534 = vadd.f32 %v472, %v533
    %535 = vdwg.mxu0
    %v536 = vmax.f32 %v517, 0.0
    %v537 = vmax.f32 %v519, 0.0
    %v538 = vmax.f32 %v522, 0.0
    %v539 = vmax.f32 %v524, 0.0
    %v540 = vmax.f32 %v527, 0.0
    %v541 = vmax.f32 %v529, 0.0
    %v542 = vmax.f32 %v532, 0.0
    %v543 = vmax.f32 %v534, 0.0
    %v544 = vld [vmem:[%s7] sm:$0xff]
    %v545 = vld [vmem:[%s7 + $0x8] sm:$0xff]
    %v546 = vld [vmem:[%s7 + $0x10] sm:$0xff]
    %v547 = vld [vmem:[%s7 + $0x18] sm:$0xff]
    %v548 = vld [vmem:[%s7 + $0x20] sm:$0xff]
    %v549 = vld [vmem:[%s7 + $0x28] sm:$0xff]
    %v550 = vld [vmem:[%s7 + $0x30] sm:$0xff]
    %v551 = vld [vmem:[%s7 + $0x38] sm:$0xff]
    %553 = vset.pattern.permute.xlu0 0
    %554 = vperm.xlu0 %553, %v544
    %v555 = vpop.permute.xlu0 %554
    %558 = vset.pattern.permute.xlu0 0
    %559 = vperm.xlu0 %558, %v545
    %v560 = vpop.permute.xlu0 %559
    %563 = vset.pattern.permute.xlu0 0
    %564 = vperm.xlu0 %563, %v546
    %v565 = vpop.permute.xlu0 %564
    %568 = vset.pattern.permute.xlu0 0
    %569 = vperm.xlu0 %568, %v547
    %v570 = vpop.permute.xlu0 %569
    %573 = vset.pattern.permute.xlu0 0
    %574 = vperm.xlu0 %573, %v548
    %v575 = vpop.permute.xlu0 %574
    %578 = vset.pattern.permute.xlu0 0
    %579 = vperm.xlu0 %578, %v549
    %v580 = vpop.permute.xlu0 %579
    %583 = vset.pattern.permute.xlu0 0
    %584 = vperm.xlu0 %583, %v550
    %v585 = vpop.permute.xlu0 %584
    %588 = vset.pattern.permute.xlu0 0
    %589 = vperm.xlu0 %588, %v551
    %v590 = vpop.permute.xlu0 %589
    %v592 = vmul.f32 %v536, %v555
    %v593 = vmul.f32 %v537, %v560
    %v594 = vmul.f32 %v538, %v565
    %v595 = vmul.f32 %v539, %v570
    %v596 = vmul.f32 %v540, %v575
    %v597 = vmul.f32 %v541, %v580
    %v598 = vmul.f32 %v542, %v585
    %v599 = vmul.f32 %v543, %v590
    %vm600 = vcmask 64512
    %v601 = vsel %vm600, %v592, 0.0
    %v602 = vsel %vm600, %v593, 0.0
    %v603 = vadd.f32 %v601, %v602
    %v604 = vsel %vm600, %v594, 0.0
    %v605 = vadd.f32 %v603, %v604
    %v606 = vsel %vm600, %v595, 0.0
    %v607 = vadd.f32 %v605, %v606
    %v608 = vsel %vm600, %v596, 0.0
    %v609 = vadd.f32 %v607, %v608
    %v610 = vsel %vm600, %v597, 0.0
    %v611 = vadd.f32 %v609, %v610
    %v612 = vsel %vm600, %v598, 0.0
    %v613 = vadd.f32 %v611, %v612
    %v614 = vsel %vm600, %v599, 0.0
    %v615 = vadd.f32 %v613, %v614
    %v616 = vrot.slane %v615, 4
    %v617 = vadd.f32 %v615, %v616
    %v618 = vrot.slane %v617, 2
    %v619 = vadd.f32 %v617, %v618
    %v620 = vrot.slane %v619, 1
    %v621 = vadd.f32 %v619, %v620
    %v622 = vld [vmem:[#allocation2] sm:$0x1]
    %624 = vset.pattern.permute.xlu0 0
    %625 = vperm.xlu0 %624, %v622
    %v626 = vpop.permute.xlu0 %625
    %v628 = vperm.slane %v626, 0
    %v629 = vadd.f32 %v621, %v628
    %v630 = vsub.f32 0.0, %v629
    %v631 = vmul.f32 %v630, 1.442695
    %v632 = vpow.pop %v631
    %v633 = vadd.f32 %v632, 1.0
    %v634 = vrcp.pop %v633
    %vm635 = vcmask 57344
    %636 = vst.msk [vmem:[#allocation3] sm:$0x1] %vm635, %v634
    // Predicated region
    $region38: #{tpu_custom_call.1} parent=1 // pred_check
      _
    $region39: #{tpu_custom_call.1} parent=1 // pred_check_branch
      %638 = sbr.rel (0) target = $region41
    $region40: #{tpu_custom_call.1} parent=1 // pred_region
      %640 = vsyncadd [#allocation4], 0
      %s642 = sshll.u32 [#allocation3], 4
      %s643 = int_to_ptr.vmem [resolvable:$true] %s642
      %s644 = sshll.u32 %s9, 4
      %s645 = int_to_ptr.hbm [resolvable:$true] %s644
      %647 = dma.vmem_to_hbm [thread:$0]  %s643, 16, %s645, [#allocation4]
    $region41: #{tpu_custom_call.1} parent=1 // pred_fallthru
      _
    // Predicated region
    $region42: #{tpu_custom_call.1} parent=1 // pred_check
      _
    $region43: #{tpu_custom_call.1} parent=1 // pred_check_branch
      %649 = sbr.rel (0) target = $region45
    $region44: #{tpu_custom_call.1} parent=1 // pred_region
      %651 = dma.done [#allocation4], 16
    $region45: #{tpu_custom_call.1} parent=1 // pred_fallthru
      _
    %652 = vsyncpa [#allocation4], 1

</llo_original>
